<compile_context>
chip_gen: v6e
topology: v6e:2x2x1
jax: 0.10.0
libtpu: 0.0.40
codegen_flags: <defaults>
</compile_context>

<pallas_src>
import math

import numpy as np
import jax
import jax.numpy as jnp
from jax.experimental import pallas as pl
from jax.experimental.pallas import tpu as pltpu


_LANE = 128
_SUBLANE = 8


def make_positional_encoding(hidden_dim: int, max_len: int = 5000,
                             dtype=jnp.float32) -> jnp.ndarray:
    """Replicates the PyTorch buffer construction. Shape (1, max_len, hidden_dim).

    Built directly in the compute dtype so the forward pass needs no cast.
    """
    position = np.arange(max_len, dtype=np.float32)[:, None]                       # (max_len, 1)
    div_term = np.exp(-np.log(10000.0) *
                      np.arange(0, hidden_dim, 2, dtype=np.float32) / hidden_dim)  # (ceil(H/2),)
    pe = np.zeros((1, max_len, hidden_dim), dtype=np.float32)
    pe[0, :, 0::2] = np.sin(position * div_term)
    pe[0, :, 1::2] = np.cos(position * div_term)[:, : hidden_dim // 2]
    return jnp.asarray(pe, dtype=dtype)


def _pe_add_kernel(x_ref, pe_ref, o_ref):
    # x_ref / o_ref: (BB, TR, C) tile; pe_ref: (1, TR, C) (broadcast over batch).
    o_ref[...] = x_ref[...] + pe_ref[...]


def _round_up(v: int, m: int) -> int:
    return (v + m - 1) // m * m


def _choose_row_tile(n_rows: int, bytes_per_row: int, tile_budget: int) -> int:
    """Largest sublane-aligned row tile with one buffer <= tile_budget, then
    re-balanced so the tail grid step isn't a mostly-padded tile."""
    if n_rows * bytes_per_row <= tile_budget:
        return int(n_rows)  # whole axis in one block (block == full dim is legal)
    tr = (tile_budget // bytes_per_row) // _SUBLANE * _SUBLANE
    tr = int(min(n_rows, max(_SUBLANE, tr)))
    n_tiles = -(-n_rows // tr)
    # Same number of grid steps, near-equal tile sizes (at most +7 rows over budget).
    tr = int(min(n_rows, _round_up(-(-n_rows // n_tiles), _SUBLANE)))
    return tr


def _tile_and_vmem_budget():
    """Per-generation (tile_bytes_target, vmem_limit_bytes)."""
    try:
        phys_vmem = int(pltpu.get_tpu_info().vmem_capacity_bytes)
    except Exception:
        phys_vmem = 64 * 1024 * 1024  # assume the smallest (v7x per-TC) if unknown
    if phys_vmem >= 128 * 1024 * 1024:          # v5e / v6e: 128 MiB physical VMEM
        return 6 * 1024 * 1024, 64 * 1024 * 1024
    return 4 * 1024 * 1024, 32 * 1024 * 1024    # v7x: 64 MiB physical per TC


def positional_encoding_forward(x: jnp.ndarray, pe_full: jnp.ndarray) -> jnp.ndarray:
    """x: (B, S, H); pe_full: (1, max_len, H). Returns x + pe_full[:, :S, :]."""
    B, S, H = x.shape
    max_len = pe_full.shape[1]
    assert S <= max_len, f"sequence length {S} exceeds positional-encoding max_len {max_len}"

    dsize = jnp.dtype(x.dtype).itemsize
    tile_budget, vmem_limit = _tile_and_vmem_budget()

    if pe_full.dtype != x.dtype:
        # Prefer building the table in the compute dtype (as in __main__) so this
        # full pass over (1, max_len, H) never runs on the hot path.
        pe_full = pe_full.astype(x.dtype)

    if H % _LANE == 0:
        # Lane-aligned hidden dim: keep (B, S, H). The PE BlockSpec indexes rows
        # straight out of the full table -> no per-call slice/cast pass.
        C, R, S_pad = H, S, S
        x_k = x
        pe_k = pe_full
        pe_is_full_table = True
    else:
        # Small / odd hidden dim: fold (S, H) into a dense 128-lane axis so the
        # output stores are unmasked. Pad S minimally when (S*H) % 128 != 0 so
        # the fold is always exact (instead of falling back to masked C=H<128
        # stores). The PE slice/reshape touches only S*H elements (not max_len*H).
        s_mult = _LANE // math.gcd(H, _LANE)
        S_pad = _round_up(S, s_mult)
        pe_rows = pe_full[:, :S, :]
        if S_pad != S:
            x = jnp.pad(x, ((0, 0), (0, S_pad - S), (0, 0)))
            pe_rows = jnp.pad(pe_rows, ((0, 0), (0, S_pad - S), (0, 0)))
        C = _LANE
        R = (S_pad * H) // _LANE
        x_k = x.reshape(B, R, C)
        pe_k = pe_rows.reshape(1, R, C)
        pe_is_full_table = False

    # Path A: block the whole batch into one tile when it fits the per-buffer
    # budget. Removes B-1 grid steps per row tile and makes the "PE fetched once
    # per row tile" property structural (also under v7x megacore row sharding).
    batch_blocked = B * min(R, _SUBLANE) * C * dsize <= tile_budget

    if batch_blocked:
        TR = _choose_row_tile(R, B * C * dsize, tile_budget)
        n_r = pl.cdiv(R, TR)
        if pe_is_full_table and TR % _SUBLANE != 0:
            # Single, non-sublane-aligned row block: make the PE block equal its
            # full dims (tiny S*H slice) to satisfy the (8, 128) block constraint.
            pe_k = pe_k[:, :R, :]
            pe_is_full_table = False
        grid = (n_r,)
        in_specs = [
            pl.BlockSpec((B, TR, C), lambda r: (0, r, 0)),   # x tile (whole batch)
            pl.BlockSpec((1, TR, C), lambda r: (0, r, 0)),   # PE tile (broadcast)
        ]
        out_specs = pl.BlockSpec((B, TR, C), lambda r: (0, r, 0))
        # v7x megacore shards the row axis; PE reads per TC stay disjoint.
        dims = ("parallel",)
    else:
        TR = _choose_row_tile(R, C * dsize, tile_budget)
        n_r = pl.cdiv(R, TR)
        if pe_is_full_table and TR % _SUBLANE != 0:
            pe_k = pe_k[:, :R, :]
            pe_is_full_table = False
        # Batch innermost: the PE block index is constant over it, so each PE
        # tile is DMA'd once per row tile. Its index changes only every B steps,
        # so single-buffer it and spend the reclaimed VMEM on a larger row tile.
        grid = (n_r, B)
        in_specs = [
            pl.BlockSpec((1, TR, C), lambda r, b: (b, r, 0)),
            pl.BlockSpec((1, TR, C), lambda r, b: (0, r, 0),
                         pipeline_mode=pl.Buffered(1)),
        ]
        out_specs = pl.BlockSpec((1, TR, C), lambda r, b: (b, r, 0))
        # Shard rows (not batch) across v7x TCs so PE traffic isn't duplicated;
        # fall back to sharding batch only when there is a single row tile.
        dims = ("parallel", "arbitrary") if n_r >= 2 else ("parallel", "parallel")

    out = pl.pallas_call(
        _pe_add_kernel,
        out_shape=jax.ShapeDtypeStruct((B, R, C), x.dtype),
        grid_spec=pltpu.PrefetchScalarGridSpec(
            num_scalar_prefetch=0,
            grid=grid,
            in_specs=in_specs,
            out_specs=out_specs,
        ),
        compiler_params=pltpu.CompilerParams(
            dimension_semantics=dims,
            vmem_limit_bytes=vmem_limit,
        ),
        cost_estimate=pl.CostEstimate(
            flops=B * S * H,
            transcendentals=0,
            bytes_accessed=(2 * B * S * H + S * H) * dsize,  # read x + write out + read PE
        ),
    )(x_k, pe_k)

    if H % _LANE == 0:
        return out
    out = out.reshape(B, S_pad, H)
    return out[:, :S, :] if S_pad != S else out


if __name__ == "__main__":
    # Small shapes consistent with the module: batch=2, seq=8, hidden=32
    B, S, H = 2, 8, 32
    max_len = 64  # keep the constant table small for the example

    key = jax.random.PRNGKey(0)
    x = jax.random.normal(key, (B, S, H), dtype=jnp.float32)

    pe_full = make_positional_encoding(hidden_dim=H, max_len=max_len, dtype=x.dtype)

    out = positional_encoding_forward(x, pe_full)
    out = jax.block_until_ready(out)

    # Correctness check against a plain-JAX reference of the PyTorch semantics.
    ref = x + pe_full[:, :S, :]
    np.testing.assert_allclose(np.asarray(out), np.asarray(ref), rtol=1e-6, atol=1e-6)

    print("KERNEL_OK")
</pallas_src>

<mosaic_0001>
module attributes {stable_mosaic.version = 11 : i64} {
  func.func @_pe_add_kernel(%arg0: i32, %arg1: memref<2x2x128xf32, #tpu.memory_space<vmem>>, %arg2: memref<1x2x128xf32, #tpu.memory_space<vmem>>, %arg3: memref<2x2x128xf32, #tpu.memory_space<vmem>>) attributes {dimension_semantics = [#tpu.dimension_semantics<parallel>], iteration_bounds = array<i64: 1>, scalar_prefetch = 0 : i64, scratch_operands = 0 : i64, tpu.core_type = #tpu.core_type<tc>, window_params = [{transform_indices = @transform_0, window_bounds = array<i64: 2, 2, 128>}, {transform_indices = @transform_1, window_bounds = array<i64: 1, 2, 128>}, {transform_indices = @transform_2, window_bounds = array<i64: 2, 2, 128>}]} {
    %c0 = arith.constant 0 : index
    %c0_0 = arith.constant 0 : index
    %c0_1 = arith.constant 0 : index
    %0 = vector.load %arg1[%c0, %c0_0, %c0_1] : memref<2x2x128xf32, #tpu.memory_space<vmem>>, vector<2x2x128xf32>
    %c0_2 = arith.constant 0 : index
    %c0_3 = arith.constant 0 : index
    %c0_4 = arith.constant 0 : index
    %1 = vector.load %arg2[%c0_2, %c0_3, %c0_4] : memref<1x2x128xf32, #tpu.memory_space<vmem>>, vector<1x2x128xf32>
    %2 = vector.broadcast %1 : vector<1x2x128xf32> to vector<2x2x128xf32>
    %3 = arith.addf %0, %2 : vector<2x2x128xf32>
    %c0_5 = arith.constant 0 : index
    %c0_6 = arith.constant 0 : index
    %c0_7 = arith.constant 0 : index
    %4 = vector.load %arg3[%c0_5, %c0_6, %c0_7] : memref<2x2x128xf32, #tpu.memory_space<vmem>>, vector<2x2x128xf32>
    tpu.vector_store %arg3[%c0_5, %c0_6, %c0_7], %3 {strides = array<i32>} : memref<2x2x128xf32, #tpu.memory_space<vmem>>, vector<2x2x128xf32>,
    return
  }
  func.func @transform_0(%arg0: i32) -> (i32, i32, i32) {
    %c0_i32 = arith.constant 0 : i32
    %c0_i32_0 = arith.constant 0 : i32
    %c0_i32_1 = arith.constant 0 : i32
    return %c0_i32, %arg0, %c0_i32_0 : i32, i32, i32
  }
  func.func @transform_1(%arg0: i32) -> (i32, i32, i32) {
    %c0_i32 = arith.constant 0 : i32
    %c0_i32_0 = arith.constant 0 : i32
    %c0_i32_1 = arith.constant 0 : i32
    return %c0_i32, %arg0, %c0_i32_0 : i32, i32, i32
  }
  func.func @transform_2(%arg0: i32) -> (i32, i32, i32) {
    %c0_i32 = arith.constant 0 : i32
    %c0_i32_0 = arith.constant 0 : i32
    %c0_i32_1 = arith.constant 0 : i32
    return %c0_i32, %arg0, %c0_i32_0 : i32, i32, i32
  }
}

</mosaic_0001>

<llo_original>
// kernel: tpu_custom_call.1
$region0: #{tpu_custom_call.1}
  #allocation0 [shape = 'u32[]', space=smem, size = 0x4, offset = 0x4, fixed_abs, tag = 'smem constant byte address 0x4 - core index']
  #allocation1 [shape = 'u32[144,128]{1,0:T(1,128)}', space=vmem, size = 0x12000, scoped, tag = 'internal scratch']
  %s0 = inlined_call_operand.hbm [shape: f32[2,2,128], index: 0, kind: input, shape index: {}]
  %s1 = inlined_call_operand.hbm [shape: f32[1,2,128], index: 1, kind: input, shape index: {}]
  %s2 = inlined_call_operand.hbm [shape: f32[2,2,128], index: 2, kind: output, shape index: {}]
  %s3 = sld [smem:[#allocation0]]
  $region26: #{tpu_custom_call.1} parent=0
    _
  %s5 = ssub.s32 1, %s3
  %s6 = scalar_select 0, %s5, %s3
  $region1: #{tpu_custom_call.1} parent=0
    #allocation2 [shape = 'u8[2048]{0}', space=vmem, size = 0x800, scoped, tag = 'input window, operand 0, single buffered']
    #allocation3 [shape = 's32[1]{0}', space=sflag, size = 0x4, scoped, tag = 'scoped memory for tpu_custom_call.1']
    #allocation4 [shape = 's32[1]{0}', space=sflag, size = 0x4, scoped, tag = 'scoped memory for tpu_custom_call.1']
    #allocation5 [shape = 'u8[1024]{0}', space=vmem, size = 0x400, scoped, tag = 'input window, operand 1, single buffered']
    #allocation6 [shape = 's32[1]{0}', space=sflag, size = 0x4, scoped, tag = 'scoped memory for tpu_custom_call.1']
    #allocation7 [shape = 'u8[2048]{0}', space=vmem, size = 0x800, scoped, tag = 'output window, operand 0, single buffered']
    %7 = vsyncpa [#allocation3], 0
    %8 = vsyncpa [#allocation6], 0
    %9 = vsyncpa [#allocation4], 0
    // Predicated region
    $region2: #{tpu_custom_call.1} parent=1 // pred_check
      _
    $region3: #{tpu_custom_call.1} parent=1 // pred_check_branch
      %11 = sbr.rel (0) target = $region5
    $region4: #{tpu_custom_call.1} parent=1 // pred_region
      %s13 = ssub.s32 64, 64
      %14 = vsyncadd [#allocation3], %s13
      %s15 = sshll.u32 [#allocation2], 4
      %s16 = int_to_ptr.vmem [resolvable:$true] %s15
      %21 = dma.hbm_to_vmem [thread:$0]  %s0, 64, %s16, [#allocation3], 32, 32, 2
    $region5: #{tpu_custom_call.1} parent=1 // pred_fallthru
      _
    // Predicated region
    $region6: #{tpu_custom_call.1} parent=1 // pred_check
      _
    $region7: #{tpu_custom_call.1} parent=1 // pred_check_branch
      %23 = sbr.rel (0) target = $region9
    $region8: #{tpu_custom_call.1} parent=1 // pred_region
      %s25 = ssub.s32 32, 32
      %26 = vsyncadd [#allocation6], %s25
      %s28 = sshll.u32 [#allocation5], 4
      %s29 = int_to_ptr.vmem [resolvable:$true] %s28
      %31 = dma.hbm_to_vmem [thread:$0]  %s1, 32, %s29, [#allocation6]
    $region9: #{tpu_custom_call.1} parent=1 // pred_fallthru
      _
    // Predicated region
    $region10: #{tpu_custom_call.1} parent=1 // pred_check
      _
    $region11: #{tpu_custom_call.1} parent=1 // pred_check_branch
      %33 = sbr.rel (0) target = $region13
    $region12: #{tpu_custom_call.1} parent=1 // pred_region
      %34 = dma.done [#allocation3], 64
    $region13: #{tpu_custom_call.1} parent=1 // pred_fallthru
      _
    // Predicated region
    $region14: #{tpu_custom_call.1} parent=1 // pred_check
      _
    $region15: #{tpu_custom_call.1} parent=1 // pred_check_branch
      %36 = sbr.rel (0) target = $region17
    $region16: #{tpu_custom_call.1} parent=1 // pred_region
      %37 = dma.done [#allocation6], 32
    $region17: #{tpu_custom_call.1} parent=1 // pred_fallthru
      _
    %v38 = vld [vmem:[#allocation2] sm:$0x3]
    %v39 = vld [vmem:[#allocation2 + $0x2] sm:$0x3]
    %v40 = vld [vmem:[#allocation5] sm:$0x3]
    %v41 = vadd.f32 %v38, %v40
    %v42 = vadd.f32 %v39, %v40
    %43 = vst [vmem:[#allocation7] sm:$0x3] %v41
    %44 = vst [vmem:[#allocation7 + $0x2] sm:$0x3] %v42
    // Predicated region
    $region18: #{tpu_custom_call.1} parent=1 // pred_check
      _
    $region19: #{tpu_custom_call.1} parent=1 // pred_check_branch
      %46 = sbr.rel (0) target = $region21
    $region20: #{tpu_custom_call.1} parent=1 // pred_region
      %s48 = ssub.s32 64, 64
      %49 = vsyncadd [#allocation4], %s48
      %s50 = sshll.u32 [#allocation7], 4
      %s51 = int_to_ptr.vmem [resolvable:$true] %s50
      %56 = dma.vmem_to_hbm [thread:$0]  %s51, 64, %s2, [#allocation4], 32, 32, 2
    $region21: #{tpu_custom_call.1} parent=1 // pred_fallthru
      _
    // Predicated region
    $region22: #{tpu_custom_call.1} parent=1 // pred_check
      _
    $region23: #{tpu_custom_call.1} parent=1 // pred_check_branch
      %58 = sbr.rel (0) target = $region25
    $region24: #{tpu_custom_call.1} parent=1 // pred_region
      %59 = dma.done [#allocation4], 64
    $region25: #{tpu_custom_call.1} parent=1 // pred_fallthru
      _
    %60 = vsyncpa [#allocation3], 1
    %61 = vsyncpa [#allocation6], 1
    %62 = vsyncpa [#allocation4], 1

</llo_original>
